<compile_context>
chip_gen: v7x
topology: tpu7x:2x2x1
jax: 0.10.0
libtpu: 0.0.40
codegen_flags: <defaults>
</compile_context>

<pallas_src>
import jax
import jax.numpy as jnp
from jax.experimental import pallas as pl
from jax.experimental.pallas import tpu as pltpu


# ---------------------------------------------------------------------------
# Primary forward path: squeeze(2) is a pure metadata reshape — zero bytes moved.
# ---------------------------------------------------------------------------
def squeeze_channels(x: jax.Array) -> jax.Array:
    assert x.ndim == 3 and x.shape[2] == 1, "expected (B, C, 1) input"
    return jnp.squeeze(x, axis=2)


# ---------------------------------------------------------------------------
# Pallas materialization, default: direct HBM -> HBM DMA (no VMEM staging).
# ---------------------------------------------------------------------------
def _dma_copy_kernel(x_hbm, o_hbm, sem):
    cp = pltpu.make_async_copy(x_hbm, o_hbm, sem)
    cp.start()
    cp.wait()


def squeeze_channels_pallas(x: jax.Array) -> jax.Array:
    """Materialized squeeze as a single HBM->HBM DMA (bandwidth floor)."""
    assert x.ndim == 3 and x.shape[2] == 1, "expected (B, C, 1) input"
    B, C, _ = x.shape
    dtype = x.dtype
    itemsize = jnp.dtype(dtype).itemsize
    x2 = x.reshape(B, C)  # free metadata squeeze before the call
    nbytes = B * C * itemsize

    return pl.pallas_call(
        _dma_copy_kernel,
        out_shape=jax.ShapeDtypeStruct((B, C), dtype),
        in_specs=[pl.BlockSpec(memory_space=pl.ANY)],
        out_specs=pl.BlockSpec(memory_space=pl.ANY),
        scratch_shapes=[pltpu.SemaphoreType.DMA],
        cost_estimate=pl.CostEstimate(
            flops=0, transcendentals=0, bytes_accessed=2 * nbytes
        ),
    )(x2)


# ---------------------------------------------------------------------------
# Pallas materialization, tiled VMEM copy (useful when fusing more compute in).
# ---------------------------------------------------------------------------
def _tile_copy_kernel(x_ref, o_ref):
    # Lane-dense whole-tile copy: full-width vld/vst, no relayout, no masking.
    o_ref[...] = x_ref[...]


def squeeze_channels_pallas_tiled(
    x: jax.Array,
    *,
    target_block_bytes: int = 4 << 20,   # ~4 MiB per block; 4 buffers ~16 MiB
    max_lane_width: int = 2048,
) -> jax.Array:
    assert x.ndim == 3 and x.shape[2] == 1, "expected (B, C, 1) input"
    B, C, _ = x.shape
    dtype = x.dtype
    itemsize = jnp.dtype(dtype).itemsize
    x2 = x.reshape(B, C)  # free metadata squeeze
    N = B * C

    # Lane width: largest multiple-of-128 divisor of N, capped at max_lane_width.
    W = None
    cap = min(max_lane_width, (N // 128) * 128)
    cand = cap
    while cand >= 128:
        if N % cand == 0:
            W = cand
            break
        cand -= 128
    flat = x2.reshape(N // W, W) if W is not None else x2
    R, Wd = flat.shape

    # Row tile sized by byte budget; multiple of 8 sublanes (or the full dim).
    rows_budget = max(1, target_block_bytes // max(1, Wd * itemsize))
    if rows_budget >= R or R <= 8:
        tb = R
    else:
        tb = min(R, max(8, (rows_budget // 8) * 8))

    grid = (pl.cdiv(R, tb),)
    block_bytes = tb * Wd * itemsize
    # in + out, double-buffered (= 4 blocks), plus headroom; stay well under
    # v7x's 64 MiB physical VMEM.
    vmem_limit = min(max(int(4 * block_bytes * 1.5) + (1 << 20), 16 << 20), 48 << 20)

    out = pl.pallas_call(
        _tile_copy_kernel,
        out_shape=jax.ShapeDtypeStruct((R, Wd), dtype),
        grid_spec=pltpu.PrefetchScalarGridSpec(
            num_scalar_prefetch=0,
            grid=grid,
            in_specs=[pl.BlockSpec((tb, Wd), lambda i: (i, 0))],
            out_specs=pl.BlockSpec((tb, Wd), lambda i: (i, 0)),
        ),
        compiler_params=pltpu.CompilerParams(
            dimension_semantics=("parallel",),  # shards tiles over v7x's 2 TCs
            vmem_limit_bytes=vmem_limit,
        ),
        cost_estimate=pl.CostEstimate(
            flops=0, transcendentals=0, bytes_accessed=2 * N * itemsize
        ),
    )(flat)

    # Free reshape back to the logical output shape.
    return out.reshape(B, C)


if __name__ == "__main__":
    key = jax.random.PRNGKey(0)
    B, C = 2, 32
    x = jax.random.normal(key, (B, C, 1), dtype=jnp.float32)
    ref = jnp.squeeze(x, axis=2)

    y0 = squeeze_channels(x)               # zero-cost metadata path
    y1 = squeeze_channels_pallas(x)        # HBM->HBM DMA path
    y2 = squeeze_channels_pallas_tiled(x)  # tiled VMEM copy (fallback layout here)
    jax.block_until_ready((y0, y1, y2))

    assert y0.shape == (B, C) and y0.dtype == x.dtype
    assert y1.shape == (B, C) and y1.dtype == x.dtype
    assert y2.shape == (B, C) and y2.dtype == x.dtype
    assert jnp.array_equal(y0, ref), "metadata-squeeze mismatch"
    assert jnp.array_equal(y1, ref), "dma-squeeze mismatch"
    assert jnp.array_equal(y2, ref), "tiled-squeeze mismatch"

    # Larger case: lane-dense flattened layout (N = 8192 -> W = 2048).
    x_big = jax.random.normal(jax.random.PRNGKey(1), (64, 128, 1), dtype=jnp.float32)
    ref_big = jnp.squeeze(x_big, axis=2)
    yb1 = squeeze_channels_pallas(x_big)
    yb2 = squeeze_channels_pallas_tiled(x_big)
    jax.block_until_ready((yb1, yb2))
    assert jnp.array_equal(yb1, ref_big), "big dma-squeeze mismatch"
    assert jnp.array_equal(yb2, ref_big), "big tiled-squeeze mismatch"

    # Non-power-of-two case: N = 3*384 = 1152 -> broadened divisor search hits
    # a multiple-of-128 lane width (1152) instead of the masked fallback.
    x_odd = jax.random.normal(jax.random.PRNGKey(2), (3, 384, 1), dtype=jnp.float32)
    ref_odd = jnp.squeeze(x_odd, axis=2)
    yo1 = squeeze_channels_pallas(x_odd)
    yo2 = squeeze_channels_pallas_tiled(x_odd)
    jax.block_until_ready((yo1, yo2))
    assert jnp.array_equal(yo1, ref_odd), "odd dma-squeeze mismatch"
    assert jnp.array_equal(yo2, ref_odd), "odd tiled-squeeze mismatch"

    print("KERNEL_OK")
</pallas_src>

<mosaic_0001>
module attributes {stable_mosaic.version = 11 : i64} {
  func.func @_dma_copy_kernel(%arg0: memref<2x32xf32, #tpu.memory_space<any>>, %arg1: memref<2x32xf32, #tpu.memory_space<any>>, %arg2: memref<!tpu.dma_semaphore, #tpu.memory_space<semaphore_mem>>) attributes {dimension_semantics = [], scalar_prefetch = 0 : i64, scratch_operands = 1 : i64, tpu.core_type = #tpu.core_type<tc>} {
    tpu.enqueue_dma source(%arg0 : memref<2x32xf32, #tpu.memory_space<any>>) target(%arg1 : memref<2x32xf32, #tpu.memory_space<any>>) target_semaphore(%arg2 : memref<!tpu.dma_semaphore, #tpu.memory_space<semaphore_mem>>)
    tpu.wait_dma2 semaphore(%arg2 : memref<!tpu.dma_semaphore, #tpu.memory_space<semaphore_mem>>) src(%arg0 : memref<2x32xf32, #tpu.memory_space<any>>) dst(%arg1 : memref<2x32xf32, #tpu.memory_space<any>>)
    return
  }
}

</mosaic_0001>

<llo_original>
// kernel: tpu_custom_call.1
$region0: #{tpu_custom_call.1}
  #allocation0 [shape = 'u32[]', space=smem, size = 0x4, offset = 0x4, fixed_abs, tag = 'smem constant byte address 0x4 - core index']
  #allocation1 [shape = 'u32[144,128]{1,0:T(1,128)}', space=vmem, size = 0x12000, scoped, tag = 'internal scratch']
  #allocation2 [shape = 's32[1]{0}', space=sflag, size = 0x4, scoped, tag = 'scratch operand']
  #allocation3 [shape = 's32[]', space=sflag, size = 0x4, offset = 0, fixed_abs, tag = 'sflag constant byte address 0x0 - dummy sync flag']
  #allocation4 [shape = 'u32[0]{0}', space=smem, size = 0, offset = 0, fixed_abs, tag = 'smem constant byte address 0x0 - null']
  %s0 = inlined_call_operand.hbm [shape: f32[2,32], index: 0, kind: input, shape index: {}]
  %s1 = inlined_call_operand.hbm [shape: f32[2,32], index: 1, kind: output, shape index: {}]
  %s2 = sld [smem:[#allocation0]]
  $region2: #{tpu_custom_call.1} parent=0
    _
  %s4 = ssub.s32 1, %s2
  %s5 = scalar_select 0, %s4, %s2
  %s7 = sshll.u32 1, 14
  %s8 = sxor.u32 4294967295, %s7
  %s11 = sshll.u32 3, 24
  %s12 = sxor.u32 4294967295, %s11
  %s13 = sand.u32 0, %s12
  %s15 = sor.u32 %s13, 0
  %18 = dma.general %s0, 32, %s1, [#allocation2], [#allocation3], [#allocation4], %s15, 0
  %s19 = smul.u32 2, 1
  %s20 = sshll.u32 %s19, 4
  %21 = dma.done [#allocation2], %s20
  %22 = vsyncmov [#allocation2]
  %s23 = vpop.sfrf %22
  %p24 = scmp.eq.s32.totalorder %s23, 0
  %p25 = pneg %p24
  %27 = shalt.err (%p25)

</llo_original>
